<compile_context>
chip_gen: v7x
topology: tpu7x:2x2x1
jax: 0.10.0
libtpu: 0.0.40
codegen_flags: <defaults>
</compile_context>

<pallas_src>
import functools

import jax
import jax.numpy as jnp
from jax.experimental import pallas as pl
from jax.experimental.pallas import tpu as pltpu

N_MELS = 64
HIDDEN_DIM = 32
LATENT_DIM = 16
OUT_PACK = 128  # lane-dense packed output: 64 recon + 16 mu + 16 logvar + 32 pad


def _vae_kernel(x_ref, eps_ref,
                w1_ref, b1_ref,
                wenc_ref, benc_ref,     # fused [HIDDEN, 2*LATENT] mu||logvar head
                w2_ref, b2_ref,
                w3_ref, b3_ref,
                out_ref):
    x = x_ref[...]                                            # [TB, N_MELS]

    # encode: fc1 -> relu
    h = jnp.dot(x, w1_ref[...], preferred_element_type=jnp.float32) + b1_ref[...]
    h = jnp.maximum(h, 0.0)

    # fused mu / logvar projection (one MXU matmul instead of two)
    mulv = jnp.dot(h, wenc_ref[...], preferred_element_type=jnp.float32) + benc_ref[...]
    mu = mulv[:, :LATENT_DIM]
    logvar = mulv[:, LATENT_DIM:]

    # reparameterize: z = mu + eps * exp(0.5 * logvar)   (f32 on VPU/EUP)
    z = mu + eps_ref[...] * jnp.exp(0.5 * logvar)

    # decode: fc2 -> relu -> fc3
    h2 = jnp.dot(z, w2_ref[...], preferred_element_type=jnp.float32) + b2_ref[...]
    h2 = jnp.maximum(h2, 0.0)
    recon = jnp.dot(h2, w3_ref[...], preferred_element_type=jnp.float32) + b3_ref[...]

    # pack recon | (mu||logvar) | zeros into one lane-dense 128-wide slab so the
    # HBM writeback is a single unmasked store.
    tb = x.shape[0]
    pad = jnp.zeros((tb, OUT_PACK - N_MELS - 2 * LATENT_DIM), jnp.float32)
    out_ref[...] = jnp.concatenate([recon, mulv, pad], axis=-1)


def _choose_tb(B):
    """Largest tile (<=2048, multiple of 8) that still leaves >=2 grid steps."""
    for cand in (2048, 1024, 512, 256, 128, 64, 32, 16, 8):
        if cand * 2 <= B and B % cand == 0:
            return cand
    return B  # tiny batch: one full-array tile


@functools.partial(jax.jit, static_argnames=("tb",))
def vae_forward(x, eps, params, *, tb=None):
    """x: [B, N_MELS] f32, eps: [B, LATENT_DIM] f32. Returns (recon, mu, logvar)."""
    B, D = x.shape
    assert D == N_MELS
    if tb is None:
        tb = _choose_tb(B)
    assert B % tb == 0, "batch must be a multiple of the batch tile"
    assert tb == B or tb % 8 == 0, "partial batch tiles must be a multiple of 8 sublanes"

    (w1, b1, wmu, bmu, wlv, blv, w2, b2, w3, b3) = params
    # fuse mu/logvar heads: [HIDDEN, 2*LATENT] weight, [1, 2*LATENT] bias
    wenc = jnp.concatenate([wmu, wlv], axis=1)
    benc = jnp.concatenate([bmu, blv], axis=1)

    grid = (B // tb,)

    def batch_spec(feat):
        return pl.BlockSpec((tb, feat), lambda i: (i, 0))

    def resident_spec(shape):
        # constant index_map -> block stays resident in VMEM across the grid
        return pl.BlockSpec(shape, lambda i: (0,) * len(shape))

    in_specs = [
        batch_spec(N_MELS),                 # x        (streamed)
        batch_spec(LATENT_DIM),             # eps      (streamed)
        resident_spec(w1.shape), resident_spec(b1.shape),
        resident_spec(wenc.shape), resident_spec(benc.shape),
        resident_spec(w2.shape), resident_spec(b2.shape),
        resident_spec(w3.shape), resident_spec(b3.shape),
    ]
    out_specs = batch_spec(OUT_PACK)        # packed recon|mu|logvar|pad
    out_shape = jax.ShapeDtypeStruct((B, OUT_PACK), jnp.float32)

    packed = pl.pallas_call(
        _vae_kernel,
        grid_spec=pltpu.PrefetchScalarGridSpec(
            num_scalar_prefetch=0,
            grid=grid,
            in_specs=in_specs,
            out_specs=out_specs,
        ),
        out_shape=out_shape,
        compiler_params=pltpu.CompilerParams(
            dimension_semantics=("parallel",)),
    )(x, eps, w1, b1, wenc, benc, w2, b2, w3, b3)

    recon = packed[:, :N_MELS]
    mu = packed[:, N_MELS:N_MELS + LATENT_DIM]
    logvar = packed[:, N_MELS + LATENT_DIM:N_MELS + 2 * LATENT_DIM]
    return recon, mu, logvar


def init_params(key, input_dim=N_MELS, hidden_dim=HIDDEN_DIM, latent_dim=LATENT_DIM):
    """Deterministic PyTorch-style Linear init (uniform +/- 1/sqrt(fan_in)).

    Weights stored as [in, out]; biases stored as [1, out] for TPU-friendly 2D.
    """
    def linear(key, fan_in, fan_out):
        kw, kb = jax.random.split(key)
        bound = 1.0 / jnp.sqrt(fan_in)
        w = jax.random.uniform(kw, (fan_in, fan_out), jnp.float32, -bound, bound)
        b = jax.random.uniform(kb, (1, fan_out), jnp.float32, -bound, bound)
        return w, b

    k1, k2, k3, k4, k5 = jax.random.split(key, 5)
    w1, b1 = linear(k1, input_dim, hidden_dim)       # fc1
    wmu, bmu = linear(k2, hidden_dim, latent_dim)    # fc_mu
    wlv, blv = linear(k3, hidden_dim, latent_dim)    # fc_logvar
    w2, b2 = linear(k4, latent_dim, hidden_dim)      # fc2
    w3, b3 = linear(k5, hidden_dim, input_dim)       # fc3
    return (w1, b1, wmu, bmu, wlv, blv, w2, b2, w3, b3)


def vae_reference(x, eps, params):
    """Pure-JAX reference of the same forward, for correctness checking."""
    (w1, b1, wmu, bmu, wlv, blv, w2, b2, w3, b3) = params
    h = jnp.maximum(x @ w1 + b1, 0.0)
    mu = h @ wmu + bmu
    logvar = h @ wlv + blv
    z = mu + eps * jnp.exp(0.5 * logvar)
    h2 = jnp.maximum(z @ w2 + b2, 0.0)
    recon = h2 @ w3 + b3
    return recon, mu, logvar


if __name__ == "__main__":
    key = jax.random.PRNGKey(0)
    kx, keps, kparam = jax.random.split(key, 3)

    # Small-but-tiled batch: 64 rows -> auto tile tb=32, 2 parallel grid steps
    # (exercises the batch pipeline and v7x dual-core sharding path).
    B = 64
    x = jax.random.normal(kx, (B, N_MELS), jnp.float32)
    eps = jax.random.normal(keps, (B, LATENT_DIM), jnp.float32)
    params = init_params(kparam)

    recon, mu, logvar = vae_forward(x, eps, params)
    jax.block_until_ready((recon, mu, logvar))

    # sanity check against pure-JAX reference
    r_ref, mu_ref, lv_ref = vae_reference(x, eps, params)
    assert jnp.allclose(recon, r_ref, atol=1e-5, rtol=1e-5)
    assert jnp.allclose(mu, mu_ref, atol=1e-5, rtol=1e-5)
    assert jnp.allclose(logvar, lv_ref, atol=1e-5, rtol=1e-5)

    print("KERNEL_OK")
</pallas_src>

<mosaic_0001>
module attributes {stable_mosaic.version = 11 : i64} {
  func.func @_vae_kernel(%arg0: i32, %arg1: memref<32x64xf32, #tpu.memory_space<vmem>>, %arg2: memref<32x16xf32, #tpu.memory_space<vmem>>, %arg3: memref<64x32xf32, #tpu.memory_space<vmem>>, %arg4: memref<1x32xf32, #tpu.memory_space<vmem>>, %arg5: memref<32x32xf32, #tpu.memory_space<vmem>>, %arg6: memref<1x32xf32, #tpu.memory_space<vmem>>, %arg7: memref<16x32xf32, #tpu.memory_space<vmem>>, %arg8: memref<1x32xf32, #tpu.memory_space<vmem>>, %arg9: memref<32x64xf32, #tpu.memory_space<vmem>>, %arg10: memref<1x64xf32, #tpu.memory_space<vmem>>, %arg11: memref<32x128xf32, #tpu.memory_space<vmem>>) attributes {dimension_semantics = [#tpu.dimension_semantics<parallel>], iteration_bounds = array<i64: 2>, scalar_prefetch = 0 : i64, scratch_operands = 0 : i64, tpu.core_type = #tpu.core_type<tc>, window_params = [{transform_indices = @transform_0, window_bounds = array<i64: 32, 64>}, {transform_indices = @transform_1, window_bounds = array<i64: 32, 16>}, {pipeline_mode = #tpu.pipeline_mode<synchronous>, transform_indices = @transform_2, window_bounds = array<i64: 64, 32>}, {pipeline_mode = #tpu.pipeline_mode<synchronous>, transform_indices = @transform_3, window_bounds = array<i64: 1, 32>}, {pipeline_mode = #tpu.pipeline_mode<synchronous>, transform_indices = @transform_4, window_bounds = array<i64: 32, 32>}, {pipeline_mode = #tpu.pipeline_mode<synchronous>, transform_indices = @transform_5, window_bounds = array<i64: 1, 32>}, {pipeline_mode = #tpu.pipeline_mode<synchronous>, transform_indices = @transform_6, window_bounds = array<i64: 16, 32>}, {pipeline_mode = #tpu.pipeline_mode<synchronous>, transform_indices = @transform_7, window_bounds = array<i64: 1, 32>}, {pipeline_mode = #tpu.pipeline_mode<synchronous>, transform_indices = @transform_8, window_bounds = array<i64: 32, 64>}, {pipeline_mode = #tpu.pipeline_mode<synchronous>, transform_indices = @transform_9, window_bounds = array<i64: 1, 64>}, {transform_indices = @transform_10, window_bounds = array<i64: 32, 128>}]} {
    %c0 = arith.constant 0 : index
    %c0_0 = arith.constant 0 : index
    %0 = vector.load %arg1[%c0, %c0_0] : memref<32x64xf32, #tpu.memory_space<vmem>>, vector<32x64xf32>
    %c0_1 = arith.constant 0 : index
    %c0_2 = arith.constant 0 : index
    %1 = vector.load %arg3[%c0_1, %c0_2] : memref<64x32xf32, #tpu.memory_space<vmem>>, vector<64x32xf32>
    %cst = arith.constant dense<0.000000e+00> : vector<32x32xf32>
    %2 = tpu.matmul %0, %1, %cst {dimension_numbers = #tpu.dot_dimension_numbers<[1], [0], [0], [1], [0, 0, 1, 1], [], []>} : vector<32x64xf32>, vector<64x32xf32>, vector<32x32xf32> -> vector<32x32xf32>
    %c0_3 = arith.constant 0 : index
    %c0_4 = arith.constant 0 : index
    %3 = vector.load %arg4[%c0_3, %c0_4] : memref<1x32xf32, #tpu.memory_space<vmem>>, vector<1x32xf32>
    %4 = vector.broadcast %3 : vector<1x32xf32> to vector<32x32xf32>
    %5 = arith.addf %2, %4 : vector<32x32xf32>
    %cst_5 = arith.constant 0.000000e+00 : f32
    %6 = vector.broadcast %cst_5 : f32 to vector<32x32xf32>
    %7 = arith.maximumf %5, %6 : vector<32x32xf32>
    %c0_6 = arith.constant 0 : index
    %c0_7 = arith.constant 0 : index
    %8 = vector.load %arg5[%c0_6, %c0_7] : memref<32x32xf32, #tpu.memory_space<vmem>>, vector<32x32xf32>
    %cst_8 = arith.constant dense<0.000000e+00> : vector<32x32xf32>
    %9 = tpu.matmul %7, %8, %cst_8 {dimension_numbers = #tpu.dot_dimension_numbers<[1], [0], [0], [1], [0, 0, 1, 1], [], []>} : vector<32x32xf32>, vector<32x32xf32>, vector<32x32xf32> -> vector<32x32xf32>
    %c0_9 = arith.constant 0 : index
    %c0_10 = arith.constant 0 : index
    %10 = vector.load %arg6[%c0_9, %c0_10] : memref<1x32xf32, #tpu.memory_space<vmem>>, vector<1x32xf32>
    %11 = vector.broadcast %10 : vector<1x32xf32> to vector<32x32xf32>
    %12 = arith.addf %9, %11 : vector<32x32xf32>
    %13 = vector.extract_strided_slice %12 {offsets = [0, 0], sizes = [32, 16], strides = [1, 1]} : vector<32x32xf32> to vector<32x16xf32>
    %14 = vector.extract_strided_slice %12 {offsets = [0, 16], sizes = [32, 16], strides = [1, 1]} : vector<32x32xf32> to vector<32x16xf32>
    %c0_11 = arith.constant 0 : index
    %c0_12 = arith.constant 0 : index
    %15 = vector.load %arg2[%c0_11, %c0_12] : memref<32x16xf32, #tpu.memory_space<vmem>>, vector<32x16xf32>
    %cst_13 = arith.constant 5.000000e-01 : f32
    %16 = vector.broadcast %cst_13 : f32 to vector<32x16xf32>
    %17 = arith.mulf %16, %14 : vector<32x16xf32>
    %18 = math.exp %17 : vector<32x16xf32>
    %19 = arith.mulf %15, %18 : vector<32x16xf32>
    %20 = arith.addf %13, %19 : vector<32x16xf32>
    %c0_14 = arith.constant 0 : index
    %c0_15 = arith.constant 0 : index
    %21 = vector.load %arg7[%c0_14, %c0_15] : memref<16x32xf32, #tpu.memory_space<vmem>>, vector<16x32xf32>
    %cst_16 = arith.constant dense<0.000000e+00> : vector<32x32xf32>
    %22 = tpu.matmul %20, %21, %cst_16 {dimension_numbers = #tpu.dot_dimension_numbers<[1], [0], [0], [1], [0, 0, 1, 1], [], []>} : vector<32x16xf32>, vector<16x32xf32>, vector<32x32xf32> -> vector<32x32xf32>
    %c0_17 = arith.constant 0 : index
    %c0_18 = arith.constant 0 : index
    %23 = vector.load %arg8[%c0_17, %c0_18] : memref<1x32xf32, #tpu.memory_space<vmem>>, vector<1x32xf32>
    %24 = vector.broadcast %23 : vector<1x32xf32> to vector<32x32xf32>
    %25 = arith.addf %22, %24 : vector<32x32xf32>
    %cst_19 = arith.constant 0.000000e+00 : f32
    %26 = vector.broadcast %cst_19 : f32 to vector<32x32xf32>
    %27 = arith.maximumf %25, %26 : vector<32x32xf32>
    %c0_20 = arith.constant 0 : index
    %c0_21 = arith.constant 0 : index
    %28 = vector.load %arg9[%c0_20, %c0_21] : memref<32x64xf32, #tpu.memory_space<vmem>>, vector<32x64xf32>
    %cst_22 = arith.constant dense<0.000000e+00> : vector<32x64xf32>
    %29 = tpu.matmul %27, %28, %cst_22 {dimension_numbers = #tpu.dot_dimension_numbers<[1], [0], [0], [1], [0, 0, 1, 1], [], []>} : vector<32x32xf32>, vector<32x64xf32>, vector<32x64xf32> -> vector<32x64xf32>
    %c0_23 = arith.constant 0 : index
    %c0_24 = arith.constant 0 : index
    %30 = vector.load %arg10[%c0_23, %c0_24] : memref<1x64xf32, #tpu.memory_space<vmem>>, vector<1x64xf32>
    %31 = vector.broadcast %30 : vector<1x64xf32> to vector<32x64xf32>
    %32 = arith.addf %29, %31 : vector<32x64xf32>
    %cst_25 = arith.constant 0.000000e+00 : f32
    %33 = vector.broadcast %cst_25 : f32 to vector<32x32xf32>
    %34 = tpu.concatenate %32, %12, %33 in 1 : vector<32x64xf32>, vector<32x32xf32>, vector<32x32xf32> -> vector<32x128xf32>
    %c0_26 = arith.constant 0 : index
    %c0_27 = arith.constant 0 : index
    %35 = vector.load %arg11[%c0_26, %c0_27] : memref<32x128xf32, #tpu.memory_space<vmem>>, vector<32x128xf32>
    tpu.vector_store %arg11[%c0_26, %c0_27], %34 {strides = array<i32>} : memref<32x128xf32, #tpu.memory_space<vmem>>, vector<32x128xf32>,
    return
  }
  func.func @transform_0(%arg0: i32) -> (i32, i32) {
    %c0_i32 = arith.constant 0 : i32
    %c0_i32_0 = arith.constant 0 : i32
    return %arg0, %c0_i32 : i32, i32
  }
  func.func @transform_1(%arg0: i32) -> (i32, i32) {
    %c0_i32 = arith.constant 0 : i32
    %c0_i32_0 = arith.constant 0 : i32
    return %arg0, %c0_i32 : i32, i32
  }
  func.func @transform_2(%arg0: i32) -> (i32, i32) {
    %c0_i32 = arith.constant 0 : i32
    %c0_i32_0 = arith.constant 0 : i32
    %c0_i32_1 = arith.constant 0 : i32
    return %c0_i32, %c0_i32_0 : i32, i32
  }
  func.func @transform_3(%arg0: i32) -> (i32, i32) {
    %c0_i32 = arith.constant 0 : i32
    %c0_i32_0 = arith.constant 0 : i32
    %c0_i32_1 = arith.constant 0 : i32
    return %c0_i32, %c0_i32_0 : i32, i32
  }
  func.func @transform_4(%arg0: i32) -> (i32, i32) {
    %c0_i32 = arith.constant 0 : i32
    %c0_i32_0 = arith.constant 0 : i32
    %c0_i32_1 = arith.constant 0 : i32
    return %c0_i32, %c0_i32_0 : i32, i32
  }
  func.func @transform_5(%arg0: i32) -> (i32, i32) {
    %c0_i32 = arith.constant 0 : i32
    %c0_i32_0 = arith.constant 0 : i32
    %c0_i32_1 = arith.constant 0 : i32
    return %c0_i32, %c0_i32_0 : i32, i32
  }
  func.func @transform_6(%arg0: i32) -> (i32, i32) {
    %c0_i32 = arith.constant 0 : i32
    %c0_i32_0 = arith.constant 0 : i32
    %c0_i32_1 = arith.constant 0 : i32
    return %c0_i32, %c0_i32_0 : i32, i32
  }
  func.func @transform_7(%arg0: i32) -> (i32, i32) {
    %c0_i32 = arith.constant 0 : i32
    %c0_i32_0 = arith.constant 0 : i32
    %c0_i32_1 = arith.constant 0 : i32
    return %c0_i32, %c0_i32_0 : i32, i32
  }
  func.func @transform_8(%arg0: i32) -> (i32, i32) {
    %c0_i32 = arith.constant 0 : i32
    %c0_i32_0 = arith.constant 0 : i32
    %c0_i32_1 = arith.constant 0 : i32
    return %c0_i32, %c0_i32_0 : i32, i32
  }
  func.func @transform_9(%arg0: i32) -> (i32, i32) {
    %c0_i32 = arith.constant 0 : i32
    %c0_i32_0 = arith.constant 0 : i32
    %c0_i32_1 = arith.constant 0 : i32
    return %c0_i32, %c0_i32_0 : i32, i32
  }
  func.func @transform_10(%arg0: i32) -> (i32, i32) {
    %c0_i32 = arith.constant 0 : i32
    %c0_i32_0 = arith.constant 0 : i32
    return %arg0, %c0_i32 : i32, i32
  }
}

</mosaic_0001>

<llo_original>
// kernel: vae_forward.1
$region0: #{vae_forward.1}
  #allocation0 [shape = 'u32[]', space=smem, size = 0x4, offset = 0x4, fixed_abs, tag = 'smem constant byte address 0x4 - core index']
  #allocation1 [shape = 'u32[144,128]{1,0:T(1,128)}', space=vmem, size = 0x12000, scoped, tag = 'internal scratch']
  %s0 = inlined_call_operand.vmem [shape: f32[64,64], index: 0, kind: input, shape index: {}]
  %s1 = inlined_call_operand.vmem [shape: f32[64,16], index: 1, kind: input, shape index: {}]
  %s2 = inlined_call_operand.vmem [shape: f32[64,32], index: 2, kind: input, shape index: {}]
  %s3 = inlined_call_operand.vmem [shape: f32[1,32], index: 3, kind: input, shape index: {}]
  %s4 = inlined_call_operand.vmem [shape: f32[32,32], index: 4, kind: input, shape index: {}]
  %s5 = inlined_call_operand.vmem [shape: f32[1,32], index: 5, kind: input, shape index: {}]
  %s6 = inlined_call_operand.vmem [shape: f32[16,32], index: 6, kind: input, shape index: {}]
  %s7 = inlined_call_operand.vmem [shape: f32[1,32], index: 7, kind: input, shape index: {}]
  %s8 = inlined_call_operand.vmem [shape: f32[32,64], index: 8, kind: input, shape index: {}]
  %s9 = inlined_call_operand.vmem [shape: f32[1,64], index: 9, kind: input, shape index: {}]
  %s10 = inlined_call_operand.vmem [shape: f32[64,128], index: 10, kind: output, shape index: {}]
  %s11 = sld [smem:[#allocation0]]
  $region73: #{vae_forward.1} parent=0
    _
  %s13 = ssub.s32 1, %s11
  %s14 = scalar_select 0, %s13, %s11
  loop: start=0, step=1, limit=4
  $region2: #{vae_forward.1} parent=0 // loop_pre_header
    _
  $region3: #{vae_forward.1} parent=0 // loop_header
    %s16 = sphi 0, %s20
    %p17 = scmp.ge.s32.totalorder %s16, 4
    %s26 = sphi 0, %s28
    %s29 = sphi 0, %s26
    %s30 = sphi 0, %s29
    %s46 = sphi 0, %s30
    %s52 = sphi 0, %s54
    %s55 = sphi 0, %s52
    %s56 = sphi 0, %s55
    %s72 = sphi 0, %s56
    %s76 = sphi 0, %s76
    %s78 = sphi 0, %s76
    %s79 = sphi 0, %s78
    %s93 = sphi 0, %s79
    %s97 = sphi 0, %s97
    %s99 = sphi 0, %s97
    %s100 = sphi 0, %s99
    %s114 = sphi 0, %s100
    %s118 = sphi 0, %s118
    %s120 = sphi 0, %s118
    %s121 = sphi 0, %s120
    %s135 = sphi 0, %s121
    %s139 = sphi 0, %s139
    %s141 = sphi 0, %s139
    %s142 = sphi 0, %s141
    %s156 = sphi 0, %s142
    %s160 = sphi 0, %s160
    %s162 = sphi 0, %s160
    %s163 = sphi 0, %s162
    %s177 = sphi 0, %s163
    %s181 = sphi 0, %s181
    %s183 = sphi 0, %s181
    %s184 = sphi 0, %s183
    %s198 = sphi 0, %s184
    %s202 = sphi 0, %s202
    %s204 = sphi 0, %s202
    %s205 = sphi 0, %s204
    %s219 = sphi 0, %s205
    %s223 = sphi 0, %s223
    %s225 = sphi 0, %s223
    %s226 = sphi 0, %s225
    %s240 = sphi 0, %s226
    %s246 = sphi 0, %s248
    %s249 = sphi 0, %s246
    %s250 = sphi 0, %s249
    %s266 = sphi 0, %s250
  $region4: #{vae_forward.1} parent=0 // loop_header_branch
    %19 = sbr.rel (%p17) target = $region8
  $region5: #{vae_forward.1} parent=0 // loop_body
    %s21 = ssub.s32 %s16, 1
    %s22 = ssub.s32 %s16, 2
    %s23 = sadd.s32 %s16, 1
    %s24 = ssub.s32 %s16, %s23
    %p25 = scmp.eq.s32.totalorder %s24, 0
    %s27 = sadd.s32 %s26, 1
    %s28 = scalar_select %p25, %s26, %s27
    %p31 = pneg %p25
    %p32 = scmp.eq.s32.totalorder %s16, 1
    %p33 = por %p31, %p32
    %p34 = scmp.ne.s32.totalorder %s26, %s29
    %p35 = scmp.eq.s32.totalorder %s16, 0
    %p36 = por %p34, %p35
    %p37 = scmp.ne.s32.totalorder %s26, %s29
    %p38 = scmp.eq.s32.totalorder %s21, 1
    %p39 = por %p37, %p38
    %p40 = scmp.ne.s32.totalorder %s29, %s30
    %p41 = scmp.eq.s32.totalorder %s21, 0
    %p42 = por %p40, %p41
    %p43 = scmp.ne.s32.totalorder %s29, %s30
    %p44 = scmp.eq.s32.totalorder %s22, 1
    %p45 = por %p43, %p44
    %p47 = scmp.ne.s32.totalorder %s30, %s46
    %p48 = scmp.eq.s32.totalorder %s22, 0
    %p49 = por %p47, %p48
    %s50 = ssub.s32 %s16, %s23
    %p51 = scmp.eq.s32.totalorder %s50, 0
    %s53 = sadd.s32 %s52, 1
    %s54 = scalar_select %p51, %s52, %s53
    %p57 = pneg %p51
    %p58 = scmp.eq.s32.totalorder %s16, 1
    %p59 = por %p57, %p58
    %p60 = scmp.ne.s32.totalorder %s52, %s55
    %p61 = scmp.eq.s32.totalorder %s16, 0
    %p62 = por %p60, %p61
    %p63 = scmp.ne.s32.totalorder %s52, %s55
    %p64 = scmp.eq.s32.totalorder %s21, 1
    %p65 = por %p63, %p64
    %p66 = scmp.ne.s32.totalorder %s55, %s56
    %p67 = scmp.eq.s32.totalorder %s21, 0
    %p68 = por %p66, %p67
    %p69 = scmp.ne.s32.totalorder %s55, %s56
    %p70 = scmp.eq.s32.totalorder %s22, 1
    %p71 = por %p69, %p70
    %p73 = scmp.ne.s32.totalorder %s56, %s72
    %p74 = scmp.eq.s32.totalorder %s22, 0
    %p75 = por %p73, %p74
    %s77 = sadd.s32 %s76, 1
    %p80 = scmp.eq.s32.totalorder %s16, 1
    %p81 = scmp.ne.s32.totalorder %s76, %s78
    %p82 = scmp.eq.s32.totalorder %s16, 0
    %p83 = por %p81, %p82
    %p84 = scmp.ne.s32.totalorder %s76, %s78
    %p85 = scmp.eq.s32.totalorder %s21, 1
    %p86 = por %p84, %p85
    %p87 = scmp.ne.s32.totalorder %s78, %s79
    %p88 = scmp.eq.s32.totalorder %s21, 0
    %p89 = por %p87, %p88
    %p90 = scmp.ne.s32.totalorder %s78, %s79
    %p91 = scmp.eq.s32.totalorder %s22, 1
    %p92 = por %p90, %p91
    %p94 = scmp.ne.s32.totalorder %s79, %s93
    %p95 = scmp.eq.s32.totalorder %s22, 0
    %p96 = por %p94, %p95
    %s98 = sadd.s32 %s97, 1
    %p101 = scmp.eq.s32.totalorder %s16, 1
    %p102 = scmp.ne.s32.totalorder %s97, %s99
    %p103 = scmp.eq.s32.totalorder %s16, 0
    %p104 = por %p102, %p103
    %p105 = scmp.ne.s32.totalorder %s97, %s99
    %p106 = scmp.eq.s32.totalorder %s21, 1
    %p107 = por %p105, %p106
    %p108 = scmp.ne.s32.totalorder %s99, %s100
    %p109 = scmp.eq.s32.totalorder %s21, 0
    %p110 = por %p108, %p109
    %p111 = scmp.ne.s32.totalorder %s99, %s100
    %p112 = scmp.eq.s32.totalorder %s22, 1
    %p113 = por %p111, %p112
    %p115 = scmp.ne.s32.totalorder %s100, %s114
    %p116 = scmp.eq.s32.totalorder %s22, 0
    %p117 = por %p115, %p116
    %s119 = sadd.s32 %s118, 1
    %p122 = scmp.eq.s32.totalorder %s16, 1
    %p123 = scmp.ne.s32.totalorder %s118, %s120
    %p124 = scmp.eq.s32.totalorder %s16, 0
    %p125 = por %p123, %p124
    %p126 = scmp.ne.s32.totalorder %s118, %s120
    %p127 = scmp.eq.s32.totalorder %s21, 1
    %p128 = por %p126, %p127
    %p129 = scmp.ne.s32.totalorder %s120, %s121
    %p130 = scmp.eq.s32.totalorder %s21, 0
    %p131 = por %p129, %p130
    %p132 = scmp.ne.s32.totalorder %s120, %s121
    %p133 = scmp.eq.s32.totalorder %s22, 1
    %p134 = por %p132, %p133
    %p136 = scmp.ne.s32.totalorder %s121, %s135
    %p137 = scmp.eq.s32.totalorder %s22, 0
    %p138 = por %p136, %p137
    %s140 = sadd.s32 %s139, 1
    %p143 = scmp.eq.s32.totalorder %s16, 1
    %p144 = scmp.ne.s32.totalorder %s139, %s141
    %p145 = scmp.eq.s32.totalorder %s16, 0
    %p146 = por %p144, %p145
    %p147 = scmp.ne.s32.totalorder %s139, %s141
    %p148 = scmp.eq.s32.totalorder %s21, 1
    %p149 = por %p147, %p148
    %p150 = scmp.ne.s32.totalorder %s141, %s142
    %p151 = scmp.eq.s32.totalorder %s21, 0
    %p152 = por %p150, %p151
    %p153 = scmp.ne.s32.totalorder %s141, %s142
    %p154 = scmp.eq.s32.totalorder %s22, 1
    %p155 = por %p153, %p154
    %p157 = scmp.ne.s32.totalorder %s142, %s156
    %p158 = scmp.eq.s32.totalorder %s22, 0
    %p159 = por %p157, %p158
    %s161 = sadd.s32 %s160, 1
    %p164 = scmp.eq.s32.totalorder %s16, 1
    %p165 = scmp.ne.s32.totalorder %s160, %s162
    %p166 = scmp.eq.s32.totalorder %s16, 0
    %p167 = por %p165, %p166
    %p168 = scmp.ne.s32.totalorder %s160, %s162
    %p169 = scmp.eq.s32.totalorder %s21, 1
    %p170 = por %p168, %p169
    %p171 = scmp.ne.s32.totalorder %s162, %s163
    %p172 = scmp.eq.s32.totalorder %s21, 0
    %p173 = por %p171, %p172
    %p174 = scmp.ne.s32.totalorder %s162, %s163
    %p175 = scmp.eq.s32.totalorder %s22, 1
    %p176 = por %p174, %p175
    %p178 = scmp.ne.s32.totalorder %s163, %s177
    %p179 = scmp.eq.s32.totalorder %s22, 0
    %p180 = por %p178, %p179
    %s182 = sadd.s32 %s181, 1
    %p185 = scmp.eq.s32.totalorder %s16, 1
    %p186 = scmp.ne.s32.totalorder %s181, %s183
    %p187 = scmp.eq.s32.totalorder %s16, 0
    %p188 = por %p186, %p187
    %p189 = scmp.ne.s32.totalorder %s181, %s183
    %p190 = scmp.eq.s32.totalorder %s21, 1
    %p191 = por %p189, %p190
    %p192 = scmp.ne.s32.totalorder %s183, %s184
    %p193 = scmp.eq.s32.totalorder %s21, 0
    %p194 = por %p192, %p193
    %p195 = scmp.ne.s32.totalorder %s183, %s184
    %p196 = scmp.eq.s32.totalorder %s22, 1
    %p197 = por %p195, %p196
    %p199 = scmp.ne.s32.totalorder %s184, %s198
    %p200 = scmp.eq.s32.totalorder %s22, 0
    %p201 = por %p199, %p200
    %s203 = sadd.s32 %s202, 1
    %p206 = scmp.eq.s32.totalorder %s16, 1
    %p207 = scmp.ne.s32.totalorder %s202, %s204
    %p208 = scmp.eq.s32.totalorder %s16, 0
    %p209 = por %p207, %p208
    %p210 = scmp.ne.s32.totalorder %s202, %s204
    %p211 = scmp.eq.s32.totalorder %s21, 1
    %p212 = por %p210, %p211
    %p213 = scmp.ne.s32.totalorder %s204, %s205
    %p214 = scmp.eq.s32.totalorder %s21, 0
    %p215 = por %p213, %p214
    %p216 = scmp.ne.s32.totalorder %s204, %s205
    %p217 = scmp.eq.s32.totalorder %s22, 1
    %p218 = por %p216, %p217
    %p220 = scmp.ne.s32.totalorder %s205, %s219
    %p221 = scmp.eq.s32.totalorder %s22, 0
    %p222 = por %p220, %p221
    %s224 = sadd.s32 %s223, 1
    %p227 = scmp.eq.s32.totalorder %s16, 1
    %p228 = scmp.ne.s32.totalorder %s223, %s225
    %p229 = scmp.eq.s32.totalorder %s16, 0
    %p230 = por %p228, %p229
    %p231 = scmp.ne.s32.totalorder %s223, %s225
    %p232 = scmp.eq.s32.totalorder %s21, 1
    %p233 = por %p231, %p232
    %p234 = scmp.ne.s32.totalorder %s225, %s226
    %p235 = scmp.eq.s32.totalorder %s21, 0
    %p236 = por %p234, %p235
    %p237 = scmp.ne.s32.totalorder %s225, %s226
    %p238 = scmp.eq.s32.totalorder %s22, 1
    %p239 = por %p237, %p238
    %p241 = scmp.ne.s32.totalorder %s226, %s240
    %p242 = scmp.eq.s32.totalorder %s22, 0
    %p243 = por %p241, %p242
    %s244 = ssub.s32 %s16, %s23
    %p245 = scmp.eq.s32.totalorder %s244, 0
    %s247 = sadd.s32 %s246, 1
    %s248 = scalar_select %p245, %s246, %s247
    %p251 = pneg %p245
    %p252 = scmp.eq.s32.totalorder %s16, 1
    %p253 = por %p251, %p252
    %p254 = scmp.ne.s32.totalorder %s246, %s249
    %p255 = scmp.eq.s32.totalorder %s16, 0
    %p256 = por %p254, %p255
    %p257 = scmp.ne.s32.totalorder %s246, %s249
    %p258 = scmp.eq.s32.totalorder %s21, 1
    %p259 = por %p257, %p258
    %p260 = scmp.ne.s32.totalorder %s249, %s250
    %p261 = scmp.eq.s32.totalorder %s21, 0
    %p262 = por %p260, %p261
    %p263 = scmp.ne.s32.totalorder %s249, %s250
    %p264 = scmp.eq.s32.totalorder %s22, 1
    %p265 = por %p263, %p264
    %p267 = scmp.ne.s32.totalorder %s250, %s266
    %p268 = scmp.eq.s32.totalorder %s22, 0
    %p269 = por %p267, %p268
    %p270 = scmp.le.s32.totalorder 1, %s16
    %p271 = scmp.lt.s32.totalorder %s16, 3
    %p272 = pnand %p270, %p271
    %p273 = pneg %p272
    // Predicated region
    $region9: #{vae_forward.1} parent=5 // pred_check
      _
    $region10: #{vae_forward.1} parent=5 // pred_check_branch
      %275 = sbr.rel (%p272) target = $region12
    $region11: #{vae_forward.1} parent=5 // pred_region
      %s276 = ssub.s32 %s16, 1
      // Predicated region
      $region13: #{vae_forward.1} parent=11 // pred_check
        %p277 = pneg %p89
      $region14: #{vae_forward.1} parent=11 // pred_check_branch
        %279 = sbr.rel (%p277) target = $region16
      $region15: #{vae_forward.1} parent=11 // pred_region
        _
      $region16: #{vae_forward.1} parent=11 // pred_fallthru
        _
      // Predicated region
      $region17: #{vae_forward.1} parent=11 // pred_check
        %p280 = pneg %p110
      $region18: #{vae_forward.1} parent=11 // pred_check_branch
        %282 = sbr.rel (%p280) target = $region20
      $region19: #{vae_forward.1} parent=11 // pred_region
        _
      $region20: #{vae_forward.1} parent=11 // pred_fallthru
        _
      // Predicated region
      $region21: #{vae_forward.1} parent=11 // pred_check
        %p283 = pneg %p131
      $region22: #{vae_forward.1} parent=11 // pred_check_branch
        %285 = sbr.rel (%p283) target = $region24
      $region23: #{vae_forward.1} parent=11 // pred_region
        _
      $region24: #{vae_forward.1} parent=11 // pred_fallthru
        _
      // Predicated region
      $region25: #{vae_forward.1} parent=11 // pred_check
        %p286 = pneg %p152
      $region26: #{vae_forward.1} parent=11 // pred_check_branch
        %288 = sbr.rel (%p286) target = $region28
      $region27: #{vae_forward.1} parent=11 // pred_region
        _
      $region28: #{vae_forward.1} parent=11 // pred_fallthru
        _
      // Predicated region
      $region29: #{vae_forward.1} parent=11 // pred_check
        %p289 = pneg %p173
      $region30: #{vae_forward.1} parent=11 // pred_check_branch
        %291 = sbr.rel (%p289) target = $region32
      $region31: #{vae_forward.1} parent=11 // pred_region
        _
      $region32: #{vae_forward.1} parent=11 // pred_fallthru
        _
      // Predicated region
      $region33: #{vae_forward.1} parent=11 // pred_check
        %p292 = pneg %p194
      $region34: #{vae_forward.1} parent=11 // pred_check_branch
        %294 = sbr.rel (%p292) target = $region36
      $region35: #{vae_forward.1} parent=11 // pred_region
        _
      $region36: #{vae_forward.1} parent=11 // pred_fallthru
        _
      // Predicated region
      $region37: #{vae_forward.1} parent=11 // pred_check
        %p295 = pneg %p215
      $region38: #{vae_forward.1} parent=11 // pred_check_branch
        %297 = sbr.rel (%p295) target = $region40
      $region39: #{vae_forward.1} parent=11 // pred_region
        _
      $region40: #{vae_forward.1} parent=11 // pred_fallthru
        _
      // Predicated region
      $region41: #{vae_forward.1} parent=11 // pred_check
        %p298 = pneg %p236
      $region42: #{vae_forward.1} parent=11 // pred_check_branch
        %300 = sbr.rel (%p298) target = $region44
      $region43: #{vae_forward.1} parent=11 // pred_region
        _
      $region44: #{vae_forward.1} parent=11 // pred_fallthru
        _
    $region12: #{vae_forward.1} parent=5 // pred_fallthru
      _
    %p301 = scmp.lt.s32.totalorder %s16, 2
    // Predicated region
    $region45: #{vae_forward.1} parent=5 // pred_check
      %p302 = pneg %p301
    $region46: #{vae_forward.1} parent=5 // pred_check_branch
      %304 = sbr.rel (%p302) target = $region48
    $region47: #{vae_forward.1} parent=5 // pred_region
      // Predicated region
      $region49: #{vae_forward.1} parent=47 // pred_check
        %p305 = pneg %p36
      $region50: #{vae_forward.1} parent=47 // pred_check_branch
        %307 = sbr.rel (%p305) target = $region52
      $region51: #{vae_forward.1} parent=47 // pred_region
        %s308 = smul.u32 4, %s16
        %p309 = scmp.lt.s32.totalorder %s308, 7
        %s310 = scalar_select %p309, %s308, 7
        %s311 = smul.addr %s310, 8
        %s312 = scalar_lea.vmem %s0, %s311
        %s313 = smul.u32 4, %s16
      $region52: #{vae_forward.1} parent=47 // pred_fallthru
        _
      // Predicated region
      $region53: #{vae_forward.1} parent=47 // pred_check
        %p314 = pneg %p62
      $region54: #{vae_forward.1} parent=47 // pred_check_branch
        %316 = sbr.rel (%p314) target = $region56
      $region55: #{vae_forward.1} parent=47 // pred_region
        %s317 = smul.u32 4, %s16
        %p318 = scmp.lt.s32.totalorder %s317, 7
        %s319 = scalar_select %p318, %s317, 7
        %s320 = smul.addr %s319, 8
        %s321 = scalar_lea.vmem %s1, %s320
        %s322 = smul.u32 4, %s16
      $region56: #{vae_forward.1} parent=47 // pred_fallthru
        _
    $region48: #{vae_forward.1} parent=5 // pred_fallthru
      _
    %p323 = scmp.le.s32.totalorder 1, %s16
    %p324 = scmp.lt.s32.totalorder %s16, 3
    %p325 = pnand %p323, %p324
    %p326 = pneg %p325
    // Predicated region
    $region57: #{vae_forward.1} parent=5 // pred_check
      _
    $region58: #{vae_forward.1} parent=5 // pred_check_branch
      %328 = sbr.rel (%p325) target = $region60
    $region59: #{vae_forward.1} parent=5 // pred_region
      %s329 = ssub.s32 %s16, 1
      %s330 = smul.u32 4, %s21
      %p331 = scmp.lt.s32.totalorder %s330, 7
      %s332 = scalar_select %p331, %s330, 7
      %s333 = smul.addr %s332, 8
      %s334 = scalar_lea.vmem %s0, %s333
      %p335 = pneg %p42
      %p336 = pneg %p39
      %s337 = smul.u32 4, %s21
      %p338 = scmp.lt.s32.totalorder %s337, 7
      %s339 = scalar_select %p338, %s337, 7
      %s340 = smul.addr %s339, 8
      %s341 = scalar_lea.vmem %s1, %s340
      %p342 = pneg %p68
      %p343 = pneg %p65
      %p344 = pneg %p89
      %p345 = pneg %p86
      %p346 = pneg %p110
      %p347 = pneg %p107
      %p348 = pneg %p131
      %p349 = pneg %p128
      %p350 = pneg %p152
      %p351 = pneg %p149
      %p352 = pneg %p173
      %p353 = pneg %p170
      %p354 = pneg %p194
      %p355 = pneg %p191
      %p356 = pneg %p215
      %p357 = pneg %p212
      %p358 = pneg %p236
      %p359 = pneg %p233
      %p360 = pneg %p262
      %p361 = pneg %p259
      %s362 = smul.u32 4, %s21
      %p363 = scmp.lt.s32.totalorder %s362, 7
      %s364 = scalar_select %p363, %s362, 7
      %s365 = smul.addr %s364, 8
      %s366 = scalar_lea.vmem %s10, %s365
      %s367 = smul.u32 4, %s21
      %p368 = scmp.lt.s32.totalorder %s367, 7
      %s369 = scalar_select %p368, %s367, 7
      %s370 = smul.addr %s369, 8
      %s371 = scalar_lea.vmem %s0, %s370
      %s372 = smul.u32 4, %s21
      %s373 = smul.u32 4, %s21
      %p374 = scmp.lt.s32.totalorder %s373, 7
      %s375 = scalar_select %p374, %s373, 7
      %s376 = smul.addr %s375, 8
      %s377 = scalar_lea.vmem %s1, %s376
      %s378 = smul.u32 4, %s21
      %s379 = smul.u32 4, %s21
      %p380 = scmp.lt.s32.totalorder %s379, 7
      %s381 = scalar_select %p380, %s379, 7
      %s382 = smul.addr %s381, 8
      %s383 = scalar_lea.vmem %s10, %s382
      %s384 = smul.u32 4, %s21
      %v385 = vld [vmem:[%s371] sm:$0xff]
      %v386 = vld [vmem:[%s371 + $0x8] sm:$0xff]
      %v387 = vld [vmem:[%s371 + $0x10] sm:$0xff]
      %v388 = vld [vmem:[%s371 + $0x18] sm:$0xff]
      %v389 = vld [vmem:[%s2] sm:$0xff]
      %v390 = vld [vmem:[%s2 + $0x8] sm:$0xff]
      %v391 = vld [vmem:[%s2 + $0x10] sm:$0xff]
      %v392 = vld [vmem:[%s2 + $0x18] sm:$0xff]
      %v393 = vld [vmem:[%s2 + $0x20] sm:$0xff]
      %v394 = vld [vmem:[%s2 + $0x28] sm:$0xff]
      %v395 = vld [vmem:[%s2 + $0x30] sm:$0xff]
      %v396 = vld [vmem:[%s2 + $0x38] sm:$0xff]
      %v397 = vld [vmem:[%s3] sm:$0x1]
      %v399 = vlaneseq
      %v400 = vshrl.u32 %v399, 7
      %v401 = vsub.s32 0, %v400
      %v402 = vrot.slane %v397, %v401
      %vm404 = vcmask 523264
      %v406 = vsel %vm404, %v385, 0
      %v409 = vsel %vm404, %v386, 0
      %v412 = vsel %vm404, %v387, 0
      %v415 = vsel %vm404, %v388, 0
      %417 = vmatprep.subr.mxu0 0.0
      %418 = vmatpush1.msra.mxu0 %v389
      %419 = vmatprep.subr.mxu0 0.0
      %420 = vmatpush1.msra.mxu0 %v390
      %421 = vmatprep.subr.mxu0 0.0
      %422 = vmatpush1.msra.mxu0 %v391
      %423 = vmatprep.subr.mxu0 0.0
      %424 = vmatpush1.msra.mxu0 %v392
      %425 = vmatprep.subr.mxu0 0.0
      %426 = vmatpush1.msra.mxu0 %v393
      %427 = vmatprep.subr.mxu0 0.0
      %428 = vmatpush1.msra.mxu0 %v394
      %429 = vmatprep.subr.mxu0 0.0
      %430 = vmatpush1.msra.mxu0 %v395
      %431 = vmatprep.subr.mxu0 0.0
      %432 = vmatpush1.msra.mxu0 %v396
      %433 = vmatprep.subr.mxu0 0.0
      %434 = vmatpush1.msra.mxu0 0.0
      %435 = vmatprep.subr.mxu0 0.0
      %436 = vmatpush1.msra.mxu0 0.0
      %437 = vmatprep.subr.mxu0 0.0
      %438 = vmatpush1.msra.mxu0 0.0
      %439 = vmatprep.subr.mxu0 0.0
      %440 = vmatpush1.msra.mxu0 0.0
      %441 = vmatprep.subr.mxu0 0.0
      %442 = vmatpush1.msra.mxu0 0.0
      %443 = vmatprep.subr.mxu0 0.0
      %444 = vmatpush1.msra.mxu0 0.0
      %445 = vmatprep.subr.mxu0 0.0
      %446 = vmatpush1.msra.mxu0 0.0
      %447 = vmatprep.subr.mxu0 0.0
      %448 = vmatpush1.msra.mxu0 0.0
      %449 = vmatprep.subr.mxu0 0.0
      %450 = vmatpush1.msra.mxu0 0.0
      %451 = vmatprep.subr.mxu0 0.0
      %452 = vmatpush1.msra.mxu0 0.0
      %453 = vmatprep.subr.mxu0 0.0
      %454 = vmatpush1.msra.mxu0 0.0
      %455 = vmatprep.subr.mxu0 0.0
      %456 = vmatpush1.msra.mxu0 0.0
      %457 = vmatprep.subr.mxu0 0.0
      %458 = vmatpush1.msra.mxu0 0.0
      %459 = vmatprep.subr.mxu0 0.0
      %460 = vmatpush1.msra.mxu0 0.0
      %461 = vmatprep.subr.mxu0 0.0
      %462 = vmatpush1.msra.mxu0 0.0
      %463 = vmatprep.subr.mxu0 0.0
      %464 = vmatpush1.msra.mxu0 0.0
      %465 = vmatprep.subr.mxu0 0.0
      %466 = vmatpush1.msra.mxu0 0.0
      %467 = vmatprep.subr.mxu0 0.0
      %468 = vmatpush1.msra.mxu0 0.0
      %469 = vmatprep.subr.mxu0 0.0
      %470 = vmatpush1.msra.mxu0 0.0
      %471 = vmatprep.subr.mxu0 0.0
      %472 = vmatpush1.msra.mxu0 0.0
      %473 = vmatprep.subr.mxu0 0.0
      %474 = vmatpush1.msra.mxu0 0.0
      %475 = vmatprep.subr.mxu0 0.0
      %476 = vmatpush1.msra.mxu0 0.0
      %477 = vmatprep.subr.mxu0 0.0
      %478 = vmatpush1.msra.mxu0 0.0
      %479 = vmatprep.subr.mxu0 0.0
      %480 = vmatpush1.msra.mxu0 0.0
      %481 = vmatprep.mubr.f32.mxu0 0.0
      %482 = vmatmul.mubr.f32.gmra.mrb[0].mxu0 %v406
      %v483 = vpop.f32.mrb[0].mxu0
      %v484 = vadd.f32 %v402, %v483
      %v485 = vpop.f32.mrb[0].mxu0
      %486 = vmatprep.mubr.f32.mxu0 0.0
      %487 = vmatmul.mubr.f32.gmra.mrb[0].mxu0 %v409
      %v488 = vpop.f32.mrb[0].mxu0
      %v489 = vadd.f32 %v402, %v488
      %v490 = vpop.f32.mrb[0].mxu0
      %491 = vmatprep.mubr.f32.mxu0 0.0
      %492 = vmatmul.mubr.f32.gmra.mrb[0].mxu0 %v412
      %v493 = vpop.f32.mrb[0].mxu0
      %v494 = vadd.f32 %v402, %v493
      %v495 = vpop.f32.mrb[0].mxu0
      %496 = vmatprep.mubr.f32.mxu0 0.0
      %497 = vmatmul.mubr.f32.gmra.mrb[0].mxu0 %v415
      %v498 = vpop.f32.mrb[0].mxu0
      %v499 = vadd.f32 %v402, %v498
      %v500 = vpop.f32.mrb[0].mxu0
      %501 = vdwg.mxu0
      %v502 = vmax.f32 %v484, 0.0
      %v503 = vmax.f32 %v489, 0.0
      %v504 = vmax.f32 %v494, 0.0
      %v505 = vmax.f32 %v499, 0.0
      %v506 = vld [vmem:[%s4] sm:$0xff]
      %v507 = vld [vmem:[%s4 + $0x8] sm:$0xff]
      %v508 = vld [vmem:[%s4 + $0x10] sm:$0xff]
      %v509 = vld [vmem:[%s4 + $0x18] sm:$0xff]
      %v510 = vld [vmem:[%s5] sm:$0x1]
      %v512 = vlaneseq
      %v513 = vshrl.u32 %v512, 7
      %v514 = vsub.s32 0, %v513
      %v515 = vrot.slane %v510, %v514
      %vm517 = vcmask 261120
      %v519 = vsel %vm517, %v502, 0
      %v522 = vsel %vm517, %v503, 0
      %v525 = vsel %vm517, %v504, 0
      %v528 = vsel %vm517, %v505, 0
      %530 = vmatprep.subr.mxu0 0.0
      %531 = vmatpush1.msra.mxu0 %v506
      %532 = vmatprep.subr.mxu0 0.0
      %533 = vmatpush1.msra.mxu0 %v507
      %534 = vmatprep.subr.mxu0 0.0
      %535 = vmatpush1.msra.mxu0 %v508
      %536 = vmatprep.subr.mxu0 0.0
      %537 = vmatpush1.msra.mxu0 %v509
      %538 = vmatprep.subr.mxu0 0.0
      %539 = vmatpush1.msra.mxu0 0.0
      %540 = vmatprep.subr.mxu0 0.0
      %541 = vmatpush1.msra.mxu0 0.0
      %542 = vmatprep.subr.mxu0 0.0
      %543 = vmatpush1.msra.mxu0 0.0
      %544 = vmatprep.subr.mxu0 0.0
      %545 = vmatpush1.msra.mxu0 0.0
      %546 = vmatprep.subr.mxu0 0.0
      %547 = vmatpush1.msra.mxu0 0.0
      %548 = vmatprep.subr.mxu0 0.0
      %549 = vmatpush1.msra.mxu0 0.0
      %550 = vmatprep.subr.mxu0 0.0
      %551 = vmatpush1.msra.mxu0 0.0
      %552 = vmatprep.subr.mxu0 0.0
      %553 = vmatpush1.msra.mxu0 0.0
      %554 = vmatprep.subr.mxu0 0.0
      %555 = vmatpush1.msra.mxu0 0.0
      %556 = vmatprep.subr.mxu0 0.0
      %557 = vmatpush1.msra.mxu0 0.0
      %558 = vmatprep.subr.mxu0 0.0
      %559 = vmatpush1.msra.mxu0 0.0
      %560 = vmatprep.subr.mxu0 0.0
      %561 = vmatpush1.msra.mxu0 0.0
      %562 = vmatprep.subr.mxu0 0.0
      %563 = vmatpush1.msra.mxu0 0.0
      %564 = vmatprep.subr.mxu0 0.0
      %565 = vmatpush1.msra.mxu0 0.0
      %566 = vmatprep.subr.mxu0 0.0
      %567 = vmatpush1.msra.mxu0 0.0
      %568 = vmatprep.subr.mxu0 0.0
      %569 = vmatpush1.msra.mxu0 0.0
      %570 = vmatprep.subr.mxu0 0.0
      %571 = vmatpush1.msra.mxu0 0.0
      %572 = vmatprep.subr.mxu0 0.0
      %573 = vmatpush1.msra.mxu0 0.0
      %574 = vmatprep.subr.mxu0 0.0
      %575 = vmatpush1.msra.mxu0 0.0
      %576 = vmatprep.subr.mxu0 0.0
      %577 = vmatpush1.msra.mxu0 0.0
      %578 = vmatprep.subr.mxu0 0.0
      %579 = vmatpush1.msra.mxu0 0.0
      %580 = vmatprep.subr.mxu0 0.0
      %581 = vmatpush1.msra.mxu0 0.0
      %582 = vmatprep.subr.mxu0 0.0
      %583 = vmatpush1.msra.mxu0 0.0
      %584 = vmatprep.subr.mxu0 0.0
      %585 = vmatpush1.msra.mxu0 0.0
      %586 = vmatprep.subr.mxu0 0.0
      %587 = vmatpush1.msra.mxu0 0.0
      %588 = vmatprep.subr.mxu0 0.0
      %589 = vmatpush1.msra.mxu0 0.0
      %590 = vmatprep.subr.mxu0 0.0
      %591 = vmatpush1.msra.mxu0 0.0
      %592 = vmatprep.subr.mxu0 0.0
      %593 = vmatpush1.msra.mxu0 0.0
      %594 = vmatprep.mubr.f32.mxu0 0.0
      %595 = vmatmul.mubr.f32.gmra.mrb[0].mxu0 %v519
      %v596 = vpop.f32.mrb[0].mxu0
      %v597 = vadd.f32 %v515, %v596
      %v598 = vpop.f32.mrb[0].mxu0
      %599 = vmatprep.mubr.f32.mxu0 0.0
      %600 = vmatmul.mubr.f32.gmra.mrb[0].mxu0 %v522
      %v601 = vpop.f32.mrb[0].mxu0
      %v602 = vadd.f32 %v515, %v601
      %v603 = vpop.f32.mrb[0].mxu0
      %604 = vmatprep.mubr.f32.mxu0 0.0
      %605 = vmatmul.mubr.f32.gmra.mrb[0].mxu0 %v525
      %v606 = vpop.f32.mrb[0].mxu0
      %v607 = vadd.f32 %v515, %v606
      %v608 = vpop.f32.mrb[0].mxu0
      %609 = vmatprep.mubr.f32.mxu0 0.0
      %610 = vmatmul.mubr.f32.gmra.mrb[0].mxu0 %v528
      %v611 = vpop.f32.mrb[0].mxu0
      %v612 = vadd.f32 %v515, %v611
      %v613 = vpop.f32.mrb[0].mxu0
      %614 = vdwg.mxu0
      %v615 = vld [vmem:[%s377] sm:$0xff]
      %v616 = vld [vmem:[%s377 + $0x8] sm:$0xff]
      %v617 = vld [vmem:[%s377 + $0x10] sm:$0xff]
      %v618 = vld [vmem:[%s377 + $0x18] sm:$0xff]
      %v619 = vmul.f32 %v597, 0.5
      %v620 = vmul.f32 %v602, 0.5
      %v621 = vmul.f32 %v607, 0.5
      %v622 = vmul.f32 %v612, 0.5
      %v623 = vmul.f32 %v619, 1.442695
      %v624 = vpow.pop %v623
      %v625 = vmul.f32 %v620, 1.442695
      %v626 = vpow.pop %v625
      %v627 = vmul.f32 %v621, 1.442695
      %v628 = vpow.pop %v627
      %v629 = vmul.f32 %v622, 1.442695
      %v630 = vpow.pop %v629
      %635 = vrot.lane.b32.xlu0 %v624, 112
      %v636 = vpop.permute.xlu0 %635
      %637 = vrot.lane.b32.xlu0 %v626, 112
      %v638 = vpop.permute.xlu0 %637
      %639 = vrot.lane.b32.xlu0 %v628, 112
      %v640 = vpop.permute.xlu0 %639
      %641 = vrot.lane.b32.xlu0 %v630, 112
      %v642 = vpop.permute.xlu0 %641
      %v647 = vmul.f32 %v615, %v636
      %v648 = vmul.f32 %v616, %v638
      %v649 = vmul.f32 %v617, %v640
      %v650 = vmul.f32 %v618, %v642
      %v651 = vadd.f32 %v597, %v647
      %v652 = vadd.f32 %v602, %v648
      %v653 = vadd.f32 %v607, %v649
      %v654 = vadd.f32 %v612, %v650
      %v655 = vld [vmem:[%s6] sm:$0xff]
      %v656 = vld [vmem:[%s6 + $0x8] sm:$0xff]
      %v657 = vld [vmem:[%s7] sm:$0x1]
      %v659 = vlaneseq
      %v660 = vshrl.u32 %v659, 7
      %v661 = vsub.s32 0, %v660
      %v662 = vrot.slane %v657, %v661
      %vm664 = vcmask 130048
      %v666 = vsel %vm664, %v651, 0
      %v669 = vsel %vm664, %v652, 0
      %v672 = vsel %vm664, %v653, 0
      %v675 = vsel %vm664, %v654, 0
      %677 = vmatprep.subr.mxu0 0.0
      %678 = vmatpush1.msra.mxu0 %v655
      %679 = vmatprep.subr.mxu0 0.0
      %680 = vmatpush1.msra.mxu0 %v656
      %681 = vmatprep.subr.mxu0 0.0
      %682 = vmatpush1.msra.mxu0 0.0
      %683 = vmatprep.subr.mxu0 0.0
      %684 = vmatpush1.msra.mxu0 0.0
      %685 = vmatprep.subr.mxu0 0.0
      %686 = vmatpush1.msra.mxu0 0.0
      %687 = vmatprep.subr.mxu0 0.0
      %688 = vmatpush1.msra.mxu0 0.0
      %689 = vmatprep.subr.mxu0 0.0
      %690 = vmatpush1.msra.mxu0 0.0
      %691 = vmatprep.subr.mxu0 0.0
      %692 = vmatpush1.msra.mxu0 0.0
      %693 = vmatprep.subr.mxu0 0.0
      %694 = vmatpush1.msra.mxu0 0.0
      %695 = vmatprep.subr.mxu0 0.0
      %696 = vmatpush1.msra.mxu0 0.0
      %697 = vmatprep.subr.mxu0 0.0
      %698 = vmatpush1.msra.mxu0 0.0
      %699 = vmatprep.subr.mxu0 0.0
      %700 = vmatpush1.msra.mxu0 0.0
      %701 = vmatprep.subr.mxu0 0.0
      %702 = vmatpush1.msra.mxu0 0.0
      %703 = vmatprep.subr.mxu0 0.0
      %704 = vmatpush1.msra.mxu0 0.0
      %705 = vmatprep.subr.mxu0 0.0
      %706 = vmatpush1.msra.mxu0 0.0
      %707 = vmatprep.subr.mxu0 0.0
      %708 = vmatpush1.msra.mxu0 0.0
      %709 = vmatprep.subr.mxu0 0.0
      %710 = vmatpush1.msra.mxu0 0.0
      %711 = vmatprep.subr.mxu0 0.0
      %712 = vmatpush1.msra.mxu0 0.0
      %713 = vmatprep.subr.mxu0 0.0
      %714 = vmatpush1.msra.mxu0 0.0
      %715 = vmatprep.subr.mxu0 0.0
      %716 = vmatpush1.msra.mxu0 0.0
      %717 = vmatprep.subr.mxu0 0.0
      %718 = vmatpush1.msra.mxu0 0.0
      %719 = vmatprep.subr.mxu0 0.0
      %720 = vmatpush1.msra.mxu0 0.0
      %721 = vmatprep.subr.mxu0 0.0
      %722 = vmatpush1.msra.mxu0 0.0
      %723 = vmatprep.subr.mxu0 0.0
      %724 = vmatpush1.msra.mxu0 0.0
      %725 = vmatprep.subr.mxu0 0.0
      %726 = vmatpush1.msra.mxu0 0.0
      %727 = vmatprep.subr.mxu0 0.0
      %728 = vmatpush1.msra.mxu0 0.0
      %729 = vmatprep.subr.mxu0 0.0
      %730 = vmatpush1.msra.mxu0 0.0
      %731 = vmatprep.subr.mxu0 0.0
      %732 = vmatpush1.msra.mxu0 0.0
      %733 = vmatprep.subr.mxu0 0.0
      %734 = vmatpush1.msra.mxu0 0.0
      %735 = vmatprep.subr.mxu0 0.0
      %736 = vmatpush1.msra.mxu0 0.0
      %737 = vmatprep.subr.mxu0 0.0
      %738 = vmatpush1.msra.mxu0 0.0
      %739 = vmatprep.subr.mxu0 0.0
      %740 = vmatpush1.msra.mxu0 0.0
      %741 = vmatprep.mubr.f32.mxu0 0.0
      %742 = vmatmul.mubr.f32.gmra.mrb[0].mxu0 %v666
      %v743 = vpop.f32.mrb[0].mxu0
      %v744 = vadd.f32 %v662, %v743
      %v745 = vpop.f32.mrb[0].mxu0
      %746 = vmatprep.mubr.f32.mxu0 0.0
      %747 = vmatmul.mubr.f32.gmra.mrb[0].mxu0 %v669
      %v748 = vpop.f32.mrb[0].mxu0
      %v749 = vadd.f32 %v662, %v748
      %v750 = vpop.f32.mrb[0].mxu0
      %751 = vmatprep.mubr.f32.mxu0 0.0
      %752 = vmatmul.mubr.f32.gmra.mrb[0].mxu0 %v672
      %v753 = vpop.f32.mrb[0].mxu0
      %v754 = vadd.f32 %v662, %v753
      %v755 = vpop.f32.mrb[0].mxu0
      %756 = vmatprep.mubr.f32.mxu0 0.0
      %757 = vmatmul.mubr.f32.gmra.mrb[0].mxu0 %v675
      %v758 = vpop.f32.mrb[0].mxu0
      %v759 = vadd.f32 %v662, %v758
      %v760 = vpop.f32.mrb[0].mxu0
      %761 = vdwg.mxu0
      %v762 = vmax.f32 %v744, 0.0
      %v763 = vmax.f32 %v749, 0.0
      %v764 = vmax.f32 %v754, 0.0
      %v765 = vmax.f32 %v759, 0.0
      %v766 = vld [vmem:[%s8] sm:$0xff]
      %v767 = vld [vmem:[%s8 + $0x8] sm:$0xff]
      %v768 = vld [vmem:[%s8 + $0x10] sm:$0xff]
      %v769 = vld [vmem:[%s8 + $0x18] sm:$0xff]
      %v770 = vld [vmem:[%s9] sm:$0x1]
      %v772 = vlaneseq
      %v773 = vshrl.u32 %v772, 7
      %v774 = vsub.s32 0, %v773
      %v775 = vrot.slane %v770, %v774
      %v778 = vsel %vm517, %v762, 0
      %v781 = vsel %vm517, %v763, 0
      %v784 = vsel %vm517, %v764, 0
      %v787 = vsel %vm517, %v765, 0
      %789 = vmatprep.subr.mxu0 0.0
      %790 = vmatpush1.msra.mxu0 %v766
      %791 = vmatprep.subr.mxu0 0.0
      %792 = vmatpush1.msra.mxu0 %v767
      %793 = vmatprep.subr.mxu0 0.0
      %794 = vmatpush1.msra.mxu0 %v768
      %795 = vmatprep.subr.mxu0 0.0
      %796 = vmatpush1.msra.mxu0 %v769
      %797 = vmatprep.subr.mxu0 0.0
      %798 = vmatpush1.msra.mxu0 0.0
      %799 = vmatprep.subr.mxu0 0.0
      %800 = vmatpush1.msra.mxu0 0.0
      %801 = vmatprep.subr.mxu0 0.0
      %802 = vmatpush1.msra.mxu0 0.0
      %803 = vmatprep.subr.mxu0 0.0
      %804 = vmatpush1.msra.mxu0 0.0
      %805 = vmatprep.subr.mxu0 0.0
      %806 = vmatpush1.msra.mxu0 0.0
      %807 = vmatprep.subr.mxu0 0.0
      %808 = vmatpush1.msra.mxu0 0.0
      %809 = vmatprep.subr.mxu0 0.0
      %810 = vmatpush1.msra.mxu0 0.0
      %811 = vmatprep.subr.mxu0 0.0
      %812 = vmatpush1.msra.mxu0 0.0
      %813 = vmatprep.subr.mxu0 0.0
      %814 = vmatpush1.msra.mxu0 0.0
      %815 = vmatprep.subr.mxu0 0.0
      %816 = vmatpush1.msra.mxu0 0.0
      %817 = vmatprep.subr.mxu0 0.0
      %818 = vmatpush1.msra.mxu0 0.0
      %819 = vmatprep.subr.mxu0 0.0
      %820 = vmatpush1.msra.mxu0 0.0
      %821 = vmatprep.subr.mxu0 0.0
      %822 = vmatpush1.msra.mxu0 0.0
      %823 = vmatprep.subr.mxu0 0.0
      %824 = vmatpush1.msra.mxu0 0.0
      %825 = vmatprep.subr.mxu0 0.0
      %826 = vmatpush1.msra.mxu0 0.0
      %827 = vmatprep.subr.mxu0 0.0
      %828 = vmatpush1.msra.mxu0 0.0
      %829 = vmatprep.subr.mxu0 0.0
      %830 = vmatpush1.msra.mxu0 0.0
      %831 = vmatprep.subr.mxu0 0.0
      %832 = vmatpush1.msra.mxu0 0.0
      %833 = vmatprep.subr.mxu0 0.0
      %834 = vmatpush1.msra.mxu0 0.0
      %835 = vmatprep.subr.mxu0 0.0
      %836 = vmatpush1.msra.mxu0 0.0
      %837 = vmatprep.subr.mxu0 0.0
      %838 = vmatpush1.msra.mxu0 0.0
      %839 = vmatprep.subr.mxu0 0.0
      %840 = vmatpush1.msra.mxu0 0.0
      %841 = vmatprep.subr.mxu0 0.0
      %842 = vmatpush1.msra.mxu0 0.0
      %843 = vmatprep.subr.mxu0 0.0
      %844 = vmatpush1.msra.mxu0 0.0
      %845 = vmatprep.subr.mxu0 0.0
      %846 = vmatpush1.msra.mxu0 0.0
      %847 = vmatprep.subr.mxu0 0.0
      %848 = vmatpush1.msra.mxu0 0.0
      %849 = vmatprep.subr.mxu0 0.0
      %850 = vmatpush1.msra.mxu0 0.0
      %851 = vmatprep.subr.mxu0 0.0
      %852 = vmatpush1.msra.mxu0 0.0
      %853 = vmatprep.mubr.f32.mxu0 0.0
      %854 = vmatmul.mubr.f32.gmra.mrb[0].mxu0 %v778
      %v855 = vpop.f32.mrb[0].mxu0
      %v856 = vadd.f32 %v775, %v855
      %v857 = vpop.f32.mrb[0].mxu0
      %858 = vmatprep.mubr.f32.mxu0 0.0
      %859 = vmatmul.mubr.f32.gmra.mrb[0].mxu0 %v781
      %v860 = vpop.f32.mrb[0].mxu0
      %v861 = vadd.f32 %v775, %v860
      %v862 = vpop.f32.mrb[0].mxu0
      %863 = vmatprep.mubr.f32.mxu0 0.0
      %864 = vmatmul.mubr.f32.gmra.mrb[0].mxu0 %v784
      %v865 = vpop.f32.mrb[0].mxu0
      %v866 = vadd.f32 %v775, %v865
      %v867 = vpop.f32.mrb[0].mxu0
      %868 = vmatprep.mubr.f32.mxu0 0.0
      %869 = vmatmul.mubr.f32.gmra.mrb[0].mxu0 %v787
      %v870 = vpop.f32.mrb[0].mxu0
      %v871 = vadd.f32 %v775, %v870
      %v872 = vpop.f32.mrb[0].mxu0
      %873 = vdwg.mxu0
      %878 = vrot.lane.b32.xlu0 %v597, 64
      %v879 = vpop.permute.xlu0 %878
      %880 = vrot.lane.b32.xlu0 %v602, 64
      %v881 = vpop.permute.xlu0 %880
      %882 = vrot.lane.b32.xlu0 %v607, 64
      %v883 = vpop.permute.xlu0 %882
      %884 = vrot.lane.b32.xlu0 %v612, 64
      %v885 = vpop.permute.xlu0 %884
      %v890 = vsel %vm404, %v856, %v879
      %v891 = vsel %vm404, %v861, %v881
      %v892 = vsel %vm404, %v866, %v883
      %v893 = vsel %vm404, %v871, %v885
      %vm894 = vcmask 785408
      %v895 = vsel %vm894, %v890, 0.0
      %v896 = vsel %vm894, %v891, 0.0
      %v897 = vsel %vm894, %v892, 0.0
      %v898 = vsel %vm894, %v893, 0.0
      %899 = vst [vmem:[%s383] sm:$0xff] %v895
      %900 = vst [vmem:[%s383 + $0x8] sm:$0xff] %v896
      %901 = vst [vmem:[%s383 + $0x10] sm:$0xff] %v897
      %902 = vst [vmem:[%s383 + $0x18] sm:$0xff] %v898
      %s903 = smul.u32 4, %s21
      %p904 = scmp.lt.s32.totalorder %s903, 7
      %s905 = scalar_select %p904, %s903, 7
      %s906 = smul.addr %s905, 8
      %s907 = scalar_lea.vmem %s10, %s906
      // Predicated region
      $region61: #{vae_forward.1} parent=59 // pred_check
        %p908 = pneg %p259
      $region62: #{vae_forward.1} parent=59 // pred_check_branch
        %910 = sbr.rel (%p908) target = $region64
      $region63: #{vae_forward.1} parent=59 // pred_region
        %s911 = smul.u32 4, %s21
      $region64: #{vae_forward.1} parent=59 // pred_fallthru
        _
    $region60: #{vae_forward.1} parent=5 // pred_fallthru
      _
    %p912 = scmp.le.s32.totalorder 2, %s16
    // Predicated region
    $region65: #{vae_forward.1} parent=5 // pred_check
      %p913 = pneg %p912
    $region66: #{vae_forward.1} parent=5 // pred_check_branch
      %915 = sbr.rel (%p913) target = $region68
    $region67: #{vae_forward.1} parent=5 // pred_region
      %s916 = ssub.s32 %s16, 2
      // Predicated region
      $region69: #{vae_forward.1} parent=67 // pred_check
        %p917 = pneg %p265
      $region70: #{vae_forward.1} parent=67 // pred_check_branch
        %919 = sbr.rel (%p917) target = $region72
      $region71: #{vae_forward.1} parent=67 // pred_region
        %s920 = smul.u32 4, %s22
        %p921 = scmp.lt.s32.totalorder %s920, 7
        %s922 = scalar_select %p921, %s920, 7
        %s923 = smul.addr %s922, 8
        %s924 = scalar_lea.vmem %s10, %s923
      $region72: #{vae_forward.1} parent=67 // pred_fallthru
        _
    $region68: #{vae_forward.1} parent=5 // pred_fallthru
      _
  $region6: #{vae_forward.1} parent=0 // loop_footer
    %s20 = sadd.s32 1, %s16
  $region7: #{vae_forward.1} parent=0 // loop_footer_branch
    %15 = sbr.rel target = $region3
  $region8: #{vae_forward.1} parent=0 // loop_exit
    _

</llo_original>
